<compile_context>
chip_gen: v7x
topology: tpu7x:2x2x1
jax: 0.10.0
libtpu: 0.0.40
codegen_flags: <defaults>
</compile_context>

<pallas_src>
import functools

import jax
import jax.numpy as jnp
from jax import lax
from jax.experimental import pallas as pl
from jax.experimental.pallas import tpu as pltpu


def _round_up(x, m):
    return ((x + m - 1) // m) * m


# ---------------------------------------------------------------------------
# Shared tail: classifier matmul (bf16 MXU, f32 accumulate) + cross entropy.
# ---------------------------------------------------------------------------
def _classify_and_loss(x_bf16, labels_col, tile_idx, w_ref, b_ref,
                       logits_ref, lsum_ref, *, num_labels, total_valid):
    logits = jnp.dot(x_bf16, w_ref[...],
                     preferred_element_type=jnp.float32) + b_ref[...]
    logits_ref[...] = logits                       # lane-dense (LP % 128 == 0)

    tb, lp = logits_ref.shape
    col = lax.broadcasted_iota(jnp.int32, (tb, lp), 1)
    masked = jnp.where(col < num_labels, logits, jnp.float32(-1e30))
    m = jnp.max(masked, axis=-1, keepdims=True)
    lse = m + jnp.log(jnp.sum(jnp.exp(masked - m), axis=-1, keepdims=True))
    picked = jnp.sum(jnp.where(col == labels_col, logits, 0.0),
                     axis=-1, keepdims=True)
    per_row = lse - picked                          # (TB, 1) f32

    # Zero out padded batch rows so the wrapper's mean over B is exact.
    row = tile_idx * tb + lax.broadcasted_iota(jnp.int32, (tb, 1), 0)
    per_row = jnp.where(row < total_valid, per_row, 0.0)

    # Lane-dense per-tile partial sum (full 128-lane store, no masked vst).
    lsum_ref[...] = jnp.broadcast_to(jnp.sum(per_row), (1, 1, 128)).astype(jnp.float32)


# ---------------------------------------------------------------------------
# Path 1: small vocab -- bf16 table resident in VMEM, one-hot MXU gather.
# ---------------------------------------------------------------------------
def _ngram_cls_kernel_vmem(labels_ref,   # (TB, 1) int32
                           ids_ref,      # (TB, 1) int32
                           emb_ref,      # (V, E) bf16, resident
                           w_ref,        # (E, LP) bf16, resident
                           b_ref,        # (1, LP) f32, resident
                           logits_ref,   # (TB, LP) f32 out
                           lsum_ref,     # (1, 1, 128) f32 out
                           *, num_labels, total_valid):
    tile = pl.program_id(0)
    tb = labels_ref.shape[0]
    v = emb_ref.shape[0]

    ids = ids_ref[...]                                         # (TB, 1)
    vocab_iota = lax.broadcasted_iota(jnp.int32, (tb, v), 1)
    onehot = (vocab_iota == ids).astype(jnp.bfloat16)          # exact row-select
    x = jnp.dot(onehot, emb_ref[...],
                preferred_element_type=jnp.float32)            # (TB, E) = bf16 rows
    _classify_and_loss(x.astype(jnp.bfloat16), labels_ref[...], tile,
                       w_ref, b_ref, logits_ref, lsum_ref,
                       num_labels=num_labels, total_valid=total_valid)


# ---------------------------------------------------------------------------
# Path 2: large vocab -- table in HBM, double-buffered DMA row gather.
# ---------------------------------------------------------------------------
def _ngram_cls_kernel_hbm(ids_smem,      # [B_pad] int32 scalar-prefetch (SMEM)
                          labels_ref,    # (TB, 1) int32 VMEM block
                          emb_hbm,       # (V, E) f32, memory_space=pl.ANY (HBM)
                          w_ref,         # (E, LP) bf16, resident
                          b_ref,         # (1, LP) f32, resident
                          logits_ref,    # (TB, LP) f32 out
                          lsum_ref,      # (1, 1, 128) f32 out
                          x_scratch,     # VMEM (2, TB, E) f32 double buffer
                          copy_sem,      # DMA semaphores (2, TB)
                          *, num_labels, total_valid, n_inner):
    o = pl.program_id(0)
    it = pl.program_id(1)
    tb = labels_ref.shape[0]
    tile = o * n_inner + it
    slot = it & 1

    def issue_rows(tile_idx, buf_slot):
        base = tile_idx * tb

        @pl.loop(0, tb)
        def _(j):
            row = ids_smem[base + j]
            pltpu.make_async_copy(emb_hbm.at[row],
                                  x_scratch.at[buf_slot, j],
                                  copy_sem.at[buf_slot, j]).start()

    def wait_rows(tile_idx, buf_slot):
        base = tile_idx * tb

        @pl.loop(0, tb)
        def _(j):
            # Rebuild the exact same descriptor (same row => same byte count).
            row = ids_smem[base + j]
            pltpu.make_async_copy(emb_hbm.at[row],
                                  x_scratch.at[buf_slot, j],
                                  copy_sem.at[buf_slot, j]).wait()

    # Prime the pipeline on the first inner step of each outer (per-core) block.
    @pl.when(it == 0)
    def _():
        issue_rows(tile, slot)

    # Prefetch the next tile's rows into the other slot before computing this one.
    @pl.when(it + 1 < n_inner)
    def _():
        issue_rows(tile + 1, 1 - slot)

    wait_rows(tile, slot)

    x = x_scratch[slot].astype(jnp.bfloat16)                   # (TB, E)
    _classify_and_loss(x, labels_ref[...], tile, w_ref, b_ref,
                       logits_ref, lsum_ref,
                       num_labels=num_labels, total_valid=total_valid)


# ---------------------------------------------------------------------------
# Wrapper
# ---------------------------------------------------------------------------
def ngram_cls_forward(input_ids, labels, embeddings, w, b, *,
                      batch_tile=128, use_vmem_table=None,
                      vmem_table_limit_bytes=4 * 1024 * 1024):
    """input_ids: [B, S] int, labels: [B] int, embeddings: [V, E] f32,
       w: [E, L] f32 (= torch linear.weight.T), b: [L] f32.
       Returns (mean cross-entropy loss, logits[B, L]) like the PyTorch module."""
    B = input_ids.shape[0]
    V, E = embeddings.shape
    L = w.shape[1]

    # Lane-dense label padding: 128, or a 256 multiple when L > 128 (v6e/v7x MXU).
    LP = 128 if L <= 128 else _round_up(L, 256)

    TB = max(8, min(_round_up(batch_tile, 8), _round_up(B, 8)))
    nb_raw = pl.cdiv(B, TB)

    if use_vmem_table is None:
        use_vmem_table = (V * E * 2) <= vmem_table_limit_bytes

    w_pad = jnp.zeros((E, LP), jnp.bfloat16).at[:, :L].set(w.astype(jnp.bfloat16))
    b_pad = jnp.zeros((1, LP), jnp.float32).at[0, :L].set(b.astype(jnp.float32))

    ids_first = input_ids[:, 0].astype(jnp.int32)
    labels_i32 = labels.astype(jnp.int32)

    if use_vmem_table:
        nb = nb_raw
        B_pad = nb * TB
        ids_col = jnp.pad(ids_first, (0, B_pad - B)).reshape(B_pad, 1)
        labels_col = jnp.pad(labels_i32, (0, B_pad - B)).reshape(B_pad, 1)
        emb_bf16 = embeddings.astype(jnp.bfloat16)         # VMEM-resident table

        kernel = functools.partial(_ngram_cls_kernel_vmem,
                                   num_labels=L, total_valid=B)
        grid_spec = pltpu.PrefetchScalarGridSpec(
            num_scalar_prefetch=0,
            grid=(nb,),
            in_specs=[
                pl.BlockSpec((TB, 1), lambda i: (i, 0)),    # labels
                pl.BlockSpec((TB, 1), lambda i: (i, 0)),    # first-token ids
                pl.BlockSpec((V, E), lambda i: (0, 0)),     # bf16 table (resident)
                pl.BlockSpec((E, LP), lambda i: (0, 0)),    # classifier weight
                pl.BlockSpec((1, LP), lambda i: (0, 0)),    # classifier bias
            ],
            out_specs=[
                pl.BlockSpec((TB, LP), lambda i: (i, 0)),        # padded logits
                pl.BlockSpec((1, 1, 128), lambda i: (i, 0, 0)),  # per-tile loss sum
            ],
        )
        vmem_est = (2 * (TB * 4 + TB * 4 + TB * LP * 4 + 128 * 4)
                    + 2 * (E * LP * 2 + LP * 4) + 2 * V * E * 2)
        dim_sem = ("parallel",)
        call_args = (labels_col, ids_col, emb_bf16, w_pad, b_pad)
        n_tiles = nb
    else:
        n_outer = 2 if nb_raw >= 2 else 1                  # >=2 parallel steps (v7x 2 TCs)
        n_inner = pl.cdiv(nb_raw, n_outer)
        nb = n_outer * n_inner
        B_pad = nb * TB
        ids_flat = jnp.pad(ids_first, (0, B_pad - B))      # -> SMEM scalar prefetch
        labels_col = jnp.pad(labels_i32, (0, B_pad - B)).reshape(B_pad, 1)
        emb_f32 = embeddings.astype(jnp.float32)           # stays in HBM

        kernel = functools.partial(_ngram_cls_kernel_hbm,
                                   num_labels=L, total_valid=B, n_inner=n_inner)
        grid_spec = pltpu.PrefetchScalarGridSpec(
            num_scalar_prefetch=1,                         # ids -> SMEM
            grid=(n_outer, n_inner),
            in_specs=[
                pl.BlockSpec((TB, 1),
                             lambda o, i, ids: (o * n_inner + i, 0)),   # labels
                pl.BlockSpec(memory_space=pl.ANY),                      # table (HBM)
                pl.BlockSpec((E, LP), lambda o, i, ids: (0, 0)),        # weight
                pl.BlockSpec((1, LP), lambda o, i, ids: (0, 0)),        # bias
            ],
            out_specs=[
                pl.BlockSpec((TB, LP),
                             lambda o, i, ids: (o * n_inner + i, 0)),
                pl.BlockSpec((1, 1, 128),
                             lambda o, i, ids: (o * n_inner + i, 0, 0)),
            ],
            scratch_shapes=[
                pltpu.VMEM((2, TB, E), jnp.float32),       # double-buffered rows
                pltpu.SemaphoreType.DMA((2, TB)),
            ],
        )
        vmem_est = (2 * (TB * 4 + TB * LP * 4 + 128 * 4)
                    + 2 * (E * LP * 2 + LP * 4) + 2 * TB * E * 4)
        dim_sem = ("parallel", "arbitrary")
        call_args = (ids_flat, labels_col, emb_f32, w_pad, b_pad)
        n_tiles = nb

    vmem_limit = int(min(56 * 1024 * 1024,
                         max(vmem_est + 8 * 1024 * 1024, 24 * 1024 * 1024)))

    logits_pad, loss_part = pl.pallas_call(
        kernel,
        out_shape=(jax.ShapeDtypeStruct((B_pad, LP), jnp.float32),
                   jax.ShapeDtypeStruct((n_tiles, 1, 128), jnp.float32)),
        grid_spec=grid_spec,
        compiler_params=pltpu.CompilerParams(
            dimension_semantics=dim_sem,
            vmem_limit_bytes=vmem_limit),
    )(*call_args)

    logits = logits_pad[:B, :L]
    loss = jnp.sum(loss_part[:, 0, 0]) / B      # CrossEntropyLoss(reduction="mean")
    return loss, logits


if __name__ == "__main__":
    # Small configuration consistent with the module; exercises BOTH gather paths.
    V, E, NUM_LABELS, S = 64, 32, 2, 8
    B_ALL = 64

    key = jax.random.PRNGKey(0)
    k_emb, k_w, k_ids, k_lab = jax.random.split(key, 4)

    # init_weights(): uniform(-0.5, 0.5) for embedding & linear weight, zero bias.
    initrange = 0.5
    embeddings = jax.random.uniform(k_emb, (V, E), jnp.float32, -initrange, initrange)
    w = jax.random.uniform(k_w, (E, NUM_LABELS), jnp.float32, -initrange, initrange)
    b = jnp.zeros((NUM_LABELS,), jnp.float32)

    input_ids = jax.random.randint(k_ids, (B_ALL, S), 0, V, dtype=jnp.int32)
    labels = jax.random.randint(k_lab, (B_ALL,), 0, NUM_LABELS, dtype=jnp.int32)

    def reference(ids, labs, bf16):
        x = embeddings[ids[:, 0]]
        if bf16:
            logits = jnp.dot(x.astype(jnp.bfloat16), w.astype(jnp.bfloat16),
                             preferred_element_type=jnp.float32) + b
        else:
            logits = x @ w + b
        lse = jax.scipy.special.logsumexp(logits, axis=-1)
        loss = jnp.mean(lse - logits[jnp.arange(ids.shape[0]), labs])
        return loss, logits

    # Path 1: VMEM-resident table (auto-selected), B=28 -> padded tiles exercised.
    loss_v, logits_v = ngram_cls_forward(input_ids[:28], labels[:28],
                                         embeddings, w, b, batch_tile=16)
    # Path 2: HBM table + double-buffered DMA gather (forced), 2x4 grid.
    loss_h, logits_h = ngram_cls_forward(input_ids[:60], labels[:60],
                                         embeddings, w, b,
                                         batch_tile=8, use_vmem_table=False)
    jax.block_until_ready((loss_v, logits_v, loss_h, logits_h))

    for (loss_k, logits_k, ids_k, labs_k, name) in [
            (loss_v, logits_v, input_ids[:28], labels[:28], "vmem"),
            (loss_h, logits_h, input_ids[:60], labels[:60], "hbm")]:
        loss_bf, logits_bf = reference(ids_k, labs_k, bf16=True)
        assert jnp.allclose(logits_k, logits_bf, atol=2e-3), f"{name}: logits mismatch"
        assert jnp.allclose(loss_k, loss_bf, atol=2e-3), f"{name}: loss mismatch"
        loss_f32, logits_f32 = reference(ids_k, labs_k, bf16=False)
        assert jnp.allclose(logits_k, logits_f32, atol=5e-2), f"{name}: logits far from f32"
        assert jnp.allclose(loss_k, loss_f32, atol=5e-2), f"{name}: loss far from f32"

    print("KERNEL_OK")
</pallas_src>

<mosaic_0001>
module attributes {stable_mosaic.version = 11 : i64} {
  func.func @_ngram_cls_kernel_vmem(%arg0: i32, %arg1: memref<16x1xi32, #tpu.memory_space<vmem>>, %arg2: memref<16x1xi32, #tpu.memory_space<vmem>>, %arg3: memref<64x32xbf16, #tpu.memory_space<vmem>>, %arg4: memref<32x128xbf16, #tpu.memory_space<vmem>>, %arg5: memref<1x128xf32, #tpu.memory_space<vmem>>, %arg6: memref<16x128xf32, #tpu.memory_space<vmem>>, %arg7: memref<1x1x128xf32, #tpu.memory_space<vmem>>) attributes {dimension_semantics = [#tpu.dimension_semantics<parallel>], iteration_bounds = array<i64: 2>, scalar_prefetch = 0 : i64, scratch_operands = 0 : i64, tpu.core_type = #tpu.core_type<tc>, window_params = [{transform_indices = @transform_0, window_bounds = array<i64: 16, 1>}, {transform_indices = @transform_1, window_bounds = array<i64: 16, 1>}, {pipeline_mode = #tpu.pipeline_mode<synchronous>, transform_indices = @transform_2, window_bounds = array<i64: 64, 32>}, {pipeline_mode = #tpu.pipeline_mode<synchronous>, transform_indices = @transform_3, window_bounds = array<i64: 32, 128>}, {pipeline_mode = #tpu.pipeline_mode<synchronous>, transform_indices = @transform_4, window_bounds = array<i64: 1, 128>}, {transform_indices = @transform_5, window_bounds = array<i64: 16, 128>}, {transform_indices = @transform_6, window_bounds = array<i64: 1, 1, 128>}]} {
    %c0 = arith.constant 0 : index
    %c0_0 = arith.constant 0 : index
    %0 = vector.load %arg2[%c0, %c0_0] : memref<16x1xi32, #tpu.memory_space<vmem>>, vector<16x1xi32>
    %1 = tpu.iota {dimensions = array<i32: 1>} : vector<16x64xi32>
    %2 = vector.broadcast %0 : vector<16x1xi32> to vector<16x64xi32>
    %3 = arith.cmpi eq, %1, %2 : vector<16x64xi32>
    %4 = arith.extui %3 : vector<16x64xi1> to vector<16x64xi32>
    %5 = arith.sitofp %4 : vector<16x64xi32> to vector<16x64xf32>
    %6 = arith.truncf %5 : vector<16x64xf32> to vector<16x64xbf16>
    %c0_1 = arith.constant 0 : index
    %c0_2 = arith.constant 0 : index
    %7 = vector.load %arg3[%c0_1, %c0_2] : memref<64x32xbf16, #tpu.memory_space<vmem>>, vector<64x32xbf16>
    %cst = arith.constant dense<0.000000e+00> : vector<16x32xf32>
    %8 = tpu.matmul %6, %7, %cst {dimension_numbers = #tpu.dot_dimension_numbers<[1], [0], [0], [1], [0, 0, 1, 1], [], []>} : vector<16x64xbf16>, vector<64x32xbf16>, vector<16x32xf32> -> vector<16x32xf32>
    %9 = arith.truncf %8 : vector<16x32xf32> to vector<16x32xbf16>
    %c0_3 = arith.constant 0 : index
    %c0_4 = arith.constant 0 : index
    %10 = vector.load %arg1[%c0_3, %c0_4] : memref<16x1xi32, #tpu.memory_space<vmem>>, vector<16x1xi32>
    %c0_5 = arith.constant 0 : index
    %c0_6 = arith.constant 0 : index
    %11 = vector.load %arg4[%c0_5, %c0_6] : memref<32x128xbf16, #tpu.memory_space<vmem>>, vector<32x128xbf16>
    %cst_7 = arith.constant dense<0.000000e+00> : vector<16x128xf32>
    %12 = tpu.matmul %9, %11, %cst_7 {dimension_numbers = #tpu.dot_dimension_numbers<[1], [0], [0], [1], [0, 0, 1, 1], [], []>} : vector<16x32xbf16>, vector<32x128xbf16>, vector<16x128xf32> -> vector<16x128xf32>
    %c0_8 = arith.constant 0 : index
    %c0_9 = arith.constant 0 : index
    %13 = vector.load %arg5[%c0_8, %c0_9] : memref<1x128xf32, #tpu.memory_space<vmem>>, vector<1x128xf32>
    %14 = vector.broadcast %13 : vector<1x128xf32> to vector<16x128xf32>
    %15 = arith.addf %12, %14 : vector<16x128xf32>
    %c0_10 = arith.constant 0 : index
    %c0_11 = arith.constant 0 : index
    %16 = vector.load %arg6[%c0_10, %c0_11] : memref<16x128xf32, #tpu.memory_space<vmem>>, vector<16x128xf32>
    tpu.vector_store %arg6[%c0_10, %c0_11], %15 {strides = array<i32>} : memref<16x128xf32, #tpu.memory_space<vmem>>, vector<16x128xf32>,
    %17 = tpu.iota {dimensions = array<i32: 1>} : vector<16x128xi32>
    %c2_i32 = arith.constant 2 : i32
    %18 = vector.broadcast %c2_i32 : i32 to vector<16x128xi32>
    %19 = arith.cmpi slt, %17, %18 : vector<16x128xi32>
    %cst_12 = arith.constant -1.000000e+30 : f32
    %20 = vector.broadcast %cst_12 : f32 to vector<16x128xf32>
    %21 = arith.select %19, %15, %20 : vector<16x128xi1>, vector<16x128xf32>
    %cst_13 = arith.constant dense<0xFF800000> : vector<16xf32>
    %22 = vector.multi_reduction <maximumf>, %21, %cst_13 [1] : vector<16x128xf32> to vector<16xf32>
    %23 = vector.shape_cast %22 : vector<16xf32> to vector<16x1xf32>
    %24 = vector.broadcast %23 : vector<16x1xf32> to vector<16x128xf32>
    %25 = arith.subf %21, %24 : vector<16x128xf32>
    %26 = math.exp %25 : vector<16x128xf32>
    %cst_14 = arith.constant dense<0.000000e+00> : vector<16xf32>
    %27 = vector.multi_reduction <add>, %26, %cst_14 [1] : vector<16x128xf32> to vector<16xf32>
    %28 = vector.shape_cast %27 : vector<16xf32> to vector<16x1xf32>
    %29 = math.log %28 : vector<16x1xf32>
    %30 = arith.addf %23, %29 : vector<16x1xf32>
    %31 = vector.broadcast %10 : vector<16x1xi32> to vector<16x128xi32>
    %32 = arith.cmpi eq, %17, %31 : vector<16x128xi32>
    %cst_15 = arith.constant 0.000000e+00 : f32
    %33 = vector.broadcast %cst_15 : f32 to vector<16x128xf32>
    %34 = arith.select %32, %15, %33 : vector<16x128xi1>, vector<16x128xf32>
    %cst_16 = arith.constant dense<0.000000e+00> : vector<16xf32>
    %35 = vector.multi_reduction <add>, %34, %cst_16 [1] : vector<16x128xf32> to vector<16xf32>
    %36 = vector.shape_cast %35 : vector<16xf32> to vector<16x1xf32>
    %37 = arith.subf %30, %36 : vector<16x1xf32>
    %c16_i32 = arith.constant 16 : i32
    %38 = arith.muli %arg0, %c16_i32 : i32
    %39 = tpu.iota {dimensions = array<i32: 0>} : vector<16x1xi32>
    %40 = vector.broadcast %38 : i32 to vector<16x1xi32>
    %41 = arith.addi %40, %39 : vector<16x1xi32>
    %c28_i32 = arith.constant 28 : i32
    %42 = vector.broadcast %c28_i32 : i32 to vector<16x1xi32>
    %43 = arith.cmpi slt, %41, %42 : vector<16x1xi32>
    %cst_17 = arith.constant 0.000000e+00 : f32
    %44 = vector.broadcast %cst_17 : f32 to vector<16x1xf32>
    %45 = arith.select %43, %37, %44 : vector<16x1xi1>, vector<16x1xf32>
    %46 = vector.shape_cast %45 : vector<16x1xf32> to vector<1x16x1xf32>
    %cst_18 = arith.constant dense<0.000000e+00> : vector<1xf32>
    %47 = vector.multi_reduction <add>, %46, %cst_18 [1, 2] : vector<1x16x1xf32> to vector<1xf32>
    %48 = vector.shape_cast %47 : vector<1xf32> to vector<1x1x1xf32>
    %49 = vector.extract %48[0, 0, 0] : f32 from vector<1x1x1xf32>
    %50 = vector.broadcast %49 : f32 to vector<1x1x128xf32>
    %c0_19 = arith.constant 0 : index
    %c0_20 = arith.constant 0 : index
    %c0_21 = arith.constant 0 : index
    %51 = vector.load %arg7[%c0_19, %c0_20, %c0_21] : memref<1x1x128xf32, #tpu.memory_space<vmem>>, vector<1x1x128xf32>
    tpu.vector_store %arg7[%c0_19, %c0_20, %c0_21], %50 {strides = array<i32>} : memref<1x1x128xf32, #tpu.memory_space<vmem>>, vector<1x1x128xf32>,
    return
  }
  func.func @transform_0(%arg0: i32) -> (i32, i32) {
    %c0_i32 = arith.constant 0 : i32
    %c0_i32_0 = arith.constant 0 : i32
    return %arg0, %c0_i32 : i32, i32
  }
  func.func @transform_1(%arg0: i32) -> (i32, i32) {
    %c0_i32 = arith.constant 0 : i32
    %c0_i32_0 = arith.constant 0 : i32
    return %arg0, %c0_i32 : i32, i32
  }
  func.func @transform_2(%arg0: i32) -> (i32, i32) {
    %c0_i32 = arith.constant 0 : i32
    %c0_i32_0 = arith.constant 0 : i32
    %c0_i32_1 = arith.constant 0 : i32
    return %c0_i32, %c0_i32_0 : i32, i32
  }
  func.func @transform_3(%arg0: i32) -> (i32, i32) {
    %c0_i32 = arith.constant 0 : i32
    %c0_i32_0 = arith.constant 0 : i32
    %c0_i32_1 = arith.constant 0 : i32
    return %c0_i32, %c0_i32_0 : i32, i32
  }
  func.func @transform_4(%arg0: i32) -> (i32, i32) {
    %c0_i32 = arith.constant 0 : i32
    %c0_i32_0 = arith.constant 0 : i32
    %c0_i32_1 = arith.constant 0 : i32
    return %c0_i32, %c0_i32_0 : i32, i32
  }
  func.func @transform_5(%arg0: i32) -> (i32, i32) {
    %c0_i32 = arith.constant 0 : i32
    %c0_i32_0 = arith.constant 0 : i32
    return %arg0, %c0_i32 : i32, i32
  }
  func.func @transform_6(%arg0: i32) -> (i32, i32, i32) {
    %c0_i32 = arith.constant 0 : i32
    %c0_i32_0 = arith.constant 0 : i32
    %c0_i32_1 = arith.constant 0 : i32
    return %arg0, %c0_i32, %c0_i32_0 : i32, i32, i32
  }
}

</mosaic_0001>

<llo_original>
// kernel: tpu_custom_call.1
$region0: #{tpu_custom_call.1}
  #allocation0 [shape = 'u32[]', space=smem, size = 0x4, offset = 0x4, fixed_abs, tag = 'smem constant byte address 0x4 - core index']
  #allocation1 [shape = 'u32[144,128]{1,0:T(1,128)}', space=vmem, size = 0x12000, scoped, tag = 'internal scratch']
  %s0 = inlined_call_operand.vmem [shape: s32[32,1], index: 0, kind: input, shape index: {}]
  %s1 = inlined_call_operand.vmem [shape: s32[32,1], index: 1, kind: input, shape index: {}]
  %s2 = inlined_call_operand.vmem [shape: bf16[64,32], index: 2, kind: input, shape index: {}]
  %s3 = inlined_call_operand.vmem [shape: bf16[32,128], index: 3, kind: input, shape index: {}]
  %s4 = inlined_call_operand.vmem [shape: f32[1,128], index: 4, kind: input, shape index: {}]
  %s5 = inlined_call_operand.hbm [shape: f32[32,128], index: 5, kind: output, shape index: {0}]
  %s6 = inlined_call_operand.hbm [shape: f32[2,1,128], index: 6, kind: output, shape index: {1}]
  %7 = xla_tuple %s5, %s6
  %s8 = sld [smem:[#allocation0]]
  $region61: #{tpu_custom_call.1} parent=0
    _
  %s10 = ssub.s32 1, %s8
  %s11 = scalar_select 0, %s10, %s8
  $region1: #{tpu_custom_call.1} parent=0
    #allocation2 [shape = 'u8[16384]{0}', space=vmem, size = 0x4000, scoped, tag = 'output window, operand 0']
    #allocation3 [shape = 's32[2]{0}', space=sflag, size = 0x8, scoped, tag = 'scoped memory for tpu_custom_call.1']
    #allocation4 [shape = 'u8[1024]{0}', space=vmem, size = 0x400, scoped, tag = 'output window, operand 1']
    #allocation5 [shape = 's32[2]{0}', space=sflag, size = 0x8, scoped, tag = 'scoped memory for tpu_custom_call.1']
    %12 = vsyncpa [#allocation3], 0
    %s13 = scalar_lea.sflag [#allocation3], 1
    %14 = vsyncpa %s13, 0
    %15 = vsyncpa [#allocation5], 0
    %s16 = scalar_lea.sflag [#allocation5], 1
    %17 = vsyncpa %s16, 0
    loop: start=0, step=1, limit=4
    $region2: #{tpu_custom_call.1} parent=1 // loop_pre_header
      _
    $region3: #{tpu_custom_call.1} parent=1 // loop_header
      %s19 = sphi 0, %s23
      %p20 = scmp.ge.s32.totalorder %s19, 4
      %s29 = sphi 0, %s31
      %s32 = sphi 0, %s29
      %s33 = sphi 0, %s32
      %s49 = sphi 0, %s33
      %s55 = sphi 0, %s57
      %s58 = sphi 0, %s55
      %s59 = sphi 0, %s58
      %s75 = sphi 0, %s59
      %s79 = sphi 0, %s79
      %s81 = sphi 0, %s79
      %s82 = sphi 0, %s81
      %s96 = sphi 0, %s82
      %s100 = sphi 0, %s100
      %s102 = sphi 0, %s100
      %s103 = sphi 0, %s102
      %s117 = sphi 0, %s103
      %s121 = sphi 0, %s121
      %s123 = sphi 0, %s121
      %s124 = sphi 0, %s123
      %s138 = sphi 0, %s124
      %s144 = sphi 0, %s146
      %s147 = sphi 0, %s144
      %s148 = sphi 0, %s147
      %s164 = sphi 0, %s148
      %s170 = sphi 0, %s172
      %s173 = sphi 0, %s170
      %s174 = sphi 0, %s173
      %s190 = sphi 0, %s174
    $region4: #{tpu_custom_call.1} parent=1 // loop_header_branch
      %22 = sbr.rel (%p20) target = $region8
    $region5: #{tpu_custom_call.1} parent=1 // loop_body
      %s24 = ssub.s32 %s19, 1
      %s25 = ssub.s32 %s19, 2
      %s26 = sadd.s32 %s19, 1
      %s27 = ssub.s32 %s19, %s26
      %p28 = scmp.eq.s32.totalorder %s27, 0
      %s30 = sadd.s32 %s29, 1
      %s31 = scalar_select %p28, %s29, %s30
      %p34 = pneg %p28
      %p35 = scmp.eq.s32.totalorder %s19, 1
      %p36 = por %p34, %p35
      %p37 = scmp.ne.s32.totalorder %s29, %s32
      %p38 = scmp.eq.s32.totalorder %s19, 0
      %p39 = por %p37, %p38
      %p40 = scmp.ne.s32.totalorder %s29, %s32
      %p41 = scmp.eq.s32.totalorder %s24, 1
      %p42 = por %p40, %p41
      %p43 = scmp.ne.s32.totalorder %s32, %s33
      %p44 = scmp.eq.s32.totalorder %s24, 0
      %p45 = por %p43, %p44
      %p46 = scmp.ne.s32.totalorder %s32, %s33
      %p47 = scmp.eq.s32.totalorder %s25, 1
      %p48 = por %p46, %p47
      %p50 = scmp.ne.s32.totalorder %s33, %s49
      %p51 = scmp.eq.s32.totalorder %s25, 0
      %p52 = por %p50, %p51
      %s53 = ssub.s32 %s19, %s26
      %p54 = scmp.eq.s32.totalorder %s53, 0
      %s56 = sadd.s32 %s55, 1
      %s57 = scalar_select %p54, %s55, %s56
      %p60 = pneg %p54
      %p61 = scmp.eq.s32.totalorder %s19, 1
      %p62 = por %p60, %p61
      %p63 = scmp.ne.s32.totalorder %s55, %s58
      %p64 = scmp.eq.s32.totalorder %s19, 0
      %p65 = por %p63, %p64
      %p66 = scmp.ne.s32.totalorder %s55, %s58
      %p67 = scmp.eq.s32.totalorder %s24, 1
      %p68 = por %p66, %p67
      %p69 = scmp.ne.s32.totalorder %s58, %s59
      %p70 = scmp.eq.s32.totalorder %s24, 0
      %p71 = por %p69, %p70
      %p72 = scmp.ne.s32.totalorder %s58, %s59
      %p73 = scmp.eq.s32.totalorder %s25, 1
      %p74 = por %p72, %p73
      %p76 = scmp.ne.s32.totalorder %s59, %s75
      %p77 = scmp.eq.s32.totalorder %s25, 0
      %p78 = por %p76, %p77
      %s80 = sadd.s32 %s79, 1
      %p83 = scmp.eq.s32.totalorder %s19, 1
      %p84 = scmp.ne.s32.totalorder %s79, %s81
      %p85 = scmp.eq.s32.totalorder %s19, 0
      %p86 = por %p84, %p85
      %p87 = scmp.ne.s32.totalorder %s79, %s81
      %p88 = scmp.eq.s32.totalorder %s24, 1
      %p89 = por %p87, %p88
      %p90 = scmp.ne.s32.totalorder %s81, %s82
      %p91 = scmp.eq.s32.totalorder %s24, 0
      %p92 = por %p90, %p91
      %p93 = scmp.ne.s32.totalorder %s81, %s82
      %p94 = scmp.eq.s32.totalorder %s25, 1
      %p95 = por %p93, %p94
      %p97 = scmp.ne.s32.totalorder %s82, %s96
      %p98 = scmp.eq.s32.totalorder %s25, 0
      %p99 = por %p97, %p98
      %s101 = sadd.s32 %s100, 1
      %p104 = scmp.eq.s32.totalorder %s19, 1
      %p105 = scmp.ne.s32.totalorder %s100, %s102
      %p106 = scmp.eq.s32.totalorder %s19, 0
      %p107 = por %p105, %p106
      %p108 = scmp.ne.s32.totalorder %s100, %s102
      %p109 = scmp.eq.s32.totalorder %s24, 1
      %p110 = por %p108, %p109
      %p111 = scmp.ne.s32.totalorder %s102, %s103
      %p112 = scmp.eq.s32.totalorder %s24, 0
      %p113 = por %p111, %p112
      %p114 = scmp.ne.s32.totalorder %s102, %s103
      %p115 = scmp.eq.s32.totalorder %s25, 1
      %p116 = por %p114, %p115
      %p118 = scmp.ne.s32.totalorder %s103, %s117
      %p119 = scmp.eq.s32.totalorder %s25, 0
      %p120 = por %p118, %p119
      %s122 = sadd.s32 %s121, 1
      %p125 = scmp.eq.s32.totalorder %s19, 1
      %p126 = scmp.ne.s32.totalorder %s121, %s123
      %p127 = scmp.eq.s32.totalorder %s19, 0
      %p128 = por %p126, %p127
      %p129 = scmp.ne.s32.totalorder %s121, %s123
      %p130 = scmp.eq.s32.totalorder %s24, 1
      %p131 = por %p129, %p130
      %p132 = scmp.ne.s32.totalorder %s123, %s124
      %p133 = scmp.eq.s32.totalorder %s24, 0
      %p134 = por %p132, %p133
      %p135 = scmp.ne.s32.totalorder %s123, %s124
      %p136 = scmp.eq.s32.totalorder %s25, 1
      %p137 = por %p135, %p136
      %p139 = scmp.ne.s32.totalorder %s124, %s138
      %p140 = scmp.eq.s32.totalorder %s25, 0
      %p141 = por %p139, %p140
      %s142 = ssub.s32 %s19, %s26
      %p143 = scmp.eq.s32.totalorder %s142, 0
      %s145 = sadd.s32 %s144, 1
      %s146 = scalar_select %p143, %s144, %s145
      %p149 = pneg %p143
      %p150 = scmp.eq.s32.totalorder %s19, 1
      %p151 = por %p149, %p150
      %p152 = scmp.ne.s32.totalorder %s144, %s147
      %p153 = scmp.eq.s32.totalorder %s19, 0
      %p154 = por %p152, %p153
      %p155 = scmp.ne.s32.totalorder %s144, %s147
      %p156 = scmp.eq.s32.totalorder %s24, 1
      %p157 = por %p155, %p156
      %p158 = scmp.ne.s32.totalorder %s147, %s148
      %p159 = scmp.eq.s32.totalorder %s24, 0
      %p160 = por %p158, %p159
      %p161 = scmp.ne.s32.totalorder %s147, %s148
      %p162 = scmp.eq.s32.totalorder %s25, 1
      %p163 = por %p161, %p162
      %p165 = scmp.ne.s32.totalorder %s148, %s164
      %p166 = scmp.eq.s32.totalorder %s25, 0
      %p167 = por %p165, %p166
      %s168 = ssub.s32 %s19, %s26
      %p169 = scmp.eq.s32.totalorder %s168, 0
      %s171 = sadd.s32 %s170, 1
      %s172 = scalar_select %p169, %s170, %s171
      %p175 = pneg %p169
      %p176 = scmp.eq.s32.totalorder %s19, 1
      %p177 = por %p175, %p176
      %p178 = scmp.ne.s32.totalorder %s170, %s173
      %p179 = scmp.eq.s32.totalorder %s19, 0
      %p180 = por %p178, %p179
      %p181 = scmp.ne.s32.totalorder %s170, %s173
      %p182 = scmp.eq.s32.totalorder %s24, 1
      %p183 = por %p181, %p182
      %p184 = scmp.ne.s32.totalorder %s173, %s174
      %p185 = scmp.eq.s32.totalorder %s24, 0
      %p186 = por %p184, %p185
      %p187 = scmp.ne.s32.totalorder %s173, %s174
      %p188 = scmp.eq.s32.totalorder %s25, 1
      %p189 = por %p187, %p188
      %p191 = scmp.ne.s32.totalorder %s174, %s190
      %p192 = scmp.eq.s32.totalorder %s25, 0
      %p193 = por %p191, %p192
      %p194 = scmp.le.s32.totalorder 1, %s19
      %p195 = scmp.lt.s32.totalorder %s19, 3
      %p196 = pnand %p194, %p195
      %p197 = pneg %p196
      // Predicated region
      $region9: #{tpu_custom_call.1} parent=5 // pred_check
        _
      $region10: #{tpu_custom_call.1} parent=5 // pred_check_branch
        %199 = sbr.rel (%p196) target = $region12
      $region11: #{tpu_custom_call.1} parent=5 // pred_region
        %s200 = ssub.s32 %s19, 1
        // Predicated region
        $region13: #{tpu_custom_call.1} parent=11 // pred_check
          %p201 = pneg %p92
        $region14: #{tpu_custom_call.1} parent=11 // pred_check_branch
          %203 = sbr.rel (%p201) target = $region16
        $region15: #{tpu_custom_call.1} parent=11 // pred_region
          _
        $region16: #{tpu_custom_call.1} parent=11 // pred_fallthru
          _
        // Predicated region
        $region17: #{tpu_custom_call.1} parent=11 // pred_check
          %p204 = pneg %p113
        $region18: #{tpu_custom_call.1} parent=11 // pred_check_branch
          %206 = sbr.rel (%p204) target = $region20
        $region19: #{tpu_custom_call.1} parent=11 // pred_region
          _
        $region20: #{tpu_custom_call.1} parent=11 // pred_fallthru
          _
        // Predicated region
        $region21: #{tpu_custom_call.1} parent=11 // pred_check
          %p207 = pneg %p134
        $region22: #{tpu_custom_call.1} parent=11 // pred_check_branch
          %209 = sbr.rel (%p207) target = $region24
        $region23: #{tpu_custom_call.1} parent=11 // pred_region
          _
        $region24: #{tpu_custom_call.1} parent=11 // pred_fallthru
          _
      $region12: #{tpu_custom_call.1} parent=5 // pred_fallthru
        _
      %p210 = scmp.lt.s32.totalorder %s19, 2
      // Predicated region
      $region25: #{tpu_custom_call.1} parent=5 // pred_check
        %p211 = pneg %p210
      $region26: #{tpu_custom_call.1} parent=5 // pred_check_branch
        %213 = sbr.rel (%p211) target = $region28
      $region27: #{tpu_custom_call.1} parent=5 // pred_region
        // Predicated region
        $region29: #{tpu_custom_call.1} parent=27 // pred_check
          %p214 = pneg %p39
        $region30: #{tpu_custom_call.1} parent=27 // pred_check_branch
          %216 = sbr.rel (%p214) target = $region32
        $region31: #{tpu_custom_call.1} parent=27 // pred_region
          %s217 = smul.u32 2, %s19
          %p218 = scmp.lt.s32.totalorder %s217, 3
          %s219 = scalar_select %p218, %s217, 3
          %s220 = smul.addr %s219, 8
          %s221 = scalar_lea.vmem %s0, %s220
          %s222 = smul.u32 2, %s19
        $region32: #{tpu_custom_call.1} parent=27 // pred_fallthru
          _
        // Predicated region
        $region33: #{tpu_custom_call.1} parent=27 // pred_check
          %p223 = pneg %p65
        $region34: #{tpu_custom_call.1} parent=27 // pred_check_branch
          %225 = sbr.rel (%p223) target = $region36
        $region35: #{tpu_custom_call.1} parent=27 // pred_region
          %s226 = smul.u32 2, %s19
          %p227 = scmp.lt.s32.totalorder %s226, 3
          %s228 = scalar_select %p227, %s226, 3
          %s229 = smul.addr %s228, 8
          %s230 = scalar_lea.vmem %s1, %s229
          %s231 = smul.u32 2, %s19
        $region36: #{tpu_custom_call.1} parent=27 // pred_fallthru
          _
      $region28: #{tpu_custom_call.1} parent=5 // pred_fallthru
        _
      %p232 = scmp.le.s32.totalorder 1, %s19
      %p233 = scmp.lt.s32.totalorder %s19, 3
      %p234 = pnand %p232, %p233
      %p235 = pneg %p234
      // Predicated region
      $region37: #{tpu_custom_call.1} parent=5 // pred_check
        _
      $region38: #{tpu_custom_call.1} parent=5 // pred_check_branch
        %237 = sbr.rel (%p234) target = $region40
      $region39: #{tpu_custom_call.1} parent=5 // pred_region
        %s238 = ssub.s32 %s19, 1
        %s239 = smul.u32 2, %s24
        %p240 = scmp.lt.s32.totalorder %s239, 3
        %s241 = scalar_select %p240, %s239, 3
        %s242 = smul.addr %s241, 8
        %s243 = scalar_lea.vmem %s0, %s242
        %p244 = pneg %p45
        %p245 = pneg %p42
        %s246 = smul.u32 2, %s24
        %p247 = scmp.lt.s32.totalorder %s246, 3
        %s248 = scalar_select %p247, %s246, 3
        %s249 = smul.addr %s248, 8
        %s250 = scalar_lea.vmem %s1, %s249
        %p251 = pneg %p71
        %p252 = pneg %p68
        %p253 = pneg %p92
        %p254 = pneg %p89
        %p255 = pneg %p113
        %p256 = pneg %p110
        %p257 = pneg %p134
        %p258 = pneg %p131
        %p259 = pneg %p160
        %p260 = pneg %p157
        %s261 = sand.u32 %s147, 1
        %s262 = scalar_lea.sflag [#allocation3], %s261
        %s263 = sand.u32 %s147, 1
        %s264 = smul.addr %s263, 16
        %s265 = scalar_lea.vmem [#allocation2], %s264
        %p266 = pneg %p186
        %p267 = pneg %p183
        %s268 = sand.u32 %s173, 1
        %s269 = scalar_lea.sflag [#allocation5], %s268
        %s270 = sand.u32 %s173, 1
        %s271 = scalar_lea.vmem [#allocation4], %s270
        %s272 = smul.u32 2, %s24
        %p273 = scmp.lt.s32.totalorder %s272, 3
        %s274 = scalar_select %p273, %s272, 3
        %s275 = smul.addr %s274, 8
        %s276 = scalar_lea.vmem %s0, %s275
        %s277 = smul.u32 2, %s24
        %s278 = smul.u32 2, %s24
        %p279 = scmp.lt.s32.totalorder %s278, 3
        %s280 = scalar_select %p279, %s278, 3
        %s281 = smul.addr %s280, 8
        %s282 = scalar_lea.vmem %s1, %s281
        %s283 = smul.u32 2, %s24
        %s284 = smul.u32 2, %s24
        %v286 = vld [vmem:[%s282] sm:$0xff]
        %v287 = vld [vmem:[%s282 + $0x8] sm:$0xff]
        %v288 = vlaneseq
        %v289 = vand.u32 %v288, 127
        %290 = vset.pattern.permute.xlu0 0
        %291 = vperm.xlu0 %290, %v286
        %v292 = vpop.permute.xlu0 %291
        %293 = vset.pattern.permute.xlu0 0
        %294 = vperm.xlu0 %293, %v287
        %v295 = vpop.permute.xlu0 %294
        %vm296 = vcmp.eq.s32.totalorder %v289, %v292
        %vm297 = vcmp.eq.s32.totalorder %v289, %v295
        %v298 = vsel %vm296, 1, 0
        %v299 = vsel %vm297, 1, 0
        %v300 = vcvt.s32.f32 %v298
        %v301 = vcvt.s32.f32 %v299
        %v302 = vpack.c.bf16 %v301, %v300
        %v303 = vld [vmem:[%s2] sm:$0xf]
        %v304 = vld [vmem:[%s2 + $0x4] sm:$0xf]
        %v305 = vld [vmem:[%s2 + $0x8] sm:$0xf]
        %v306 = vld [vmem:[%s2 + $0xc] sm:$0xf]
        %v307 = vld [vmem:[%s2 + $0x10] sm:$0xf]
        %v308 = vld [vmem:[%s2 + $0x14] sm:$0xf]
        %v309 = vld [vmem:[%s2 + $0x18] sm:$0xf]
        %v310 = vld [vmem:[%s2 + $0x1c] sm:$0xf]
        %v319 = vunpack.c.l.b16 %v303
        %v320 = vunpack.c.l.b16 %v304
        %v321 = vunpack.c.l.b16 %v305
        %v322 = vunpack.c.l.b16 %v306
        %v323 = vunpack.c.l.b16 %v307
        %v324 = vunpack.c.l.b16 %v308
        %v325 = vunpack.c.l.b16 %v309
        %v326 = vunpack.c.l.b16 %v310
        %v327 = vpack.c.b16 %v320, %v319
        %v328 = vpack.c.b16 %v322, %v321
        %v329 = vpack.c.b16 %v324, %v323
        %v330 = vpack.c.b16 %v326, %v325
        %vm335 = vcmask 523264
        %v337 = vsel %vm335, %v302, 0
        %339 = vmatprep.subr.bf16.mxu0 0
        %340 = vmatpush1.bf16.msra.mxu0 %v327
        %341 = vmatprep.subr.bf16.mxu0 0
        %342 = vmatpush1.bf16.msra.mxu0 %v328
        %343 = vmatprep.subr.bf16.mxu0 0
        %344 = vmatpush1.bf16.msra.mxu0 %v329
        %345 = vmatprep.subr.bf16.mxu0 0
        %346 = vmatpush1.bf16.msra.mxu0 %v330
        %347 = vmatprep.subr.bf16.mxu0 0
        %348 = vmatpush1.bf16.msra.mxu0 0
        %349 = vmatprep.subr.bf16.mxu0 0
        %350 = vmatpush1.bf16.msra.mxu0 0
        %351 = vmatprep.subr.bf16.mxu0 0
        %352 = vmatpush1.bf16.msra.mxu0 0
        %353 = vmatprep.subr.bf16.mxu0 0
        %354 = vmatpush1.bf16.msra.mxu0 0
        %355 = vmatprep.subr.bf16.mxu0 0
        %356 = vmatpush1.bf16.msra.mxu0 0
        %357 = vmatprep.subr.bf16.mxu0 0
        %358 = vmatpush1.bf16.msra.mxu0 0
        %359 = vmatprep.subr.bf16.mxu0 0
        %360 = vmatpush1.bf16.msra.mxu0 0
        %361 = vmatprep.subr.bf16.mxu0 0
        %362 = vmatpush1.bf16.msra.mxu0 0
        %363 = vmatprep.subr.bf16.mxu0 0
        %364 = vmatpush1.bf16.msra.mxu0 0
        %365 = vmatprep.subr.bf16.mxu0 0
        %366 = vmatpush1.bf16.msra.mxu0 0
        %367 = vmatprep.subr.bf16.mxu0 0
        %368 = vmatpush1.bf16.msra.mxu0 0
        %369 = vmatprep.subr.bf16.mxu0 0
        %370 = vmatpush1.bf16.msra.mxu0 0
        %371 = vmatprep.mubr.bf16.mxu0 0
        %372 = vmatmul.mubr.bf16.gmra.mrb[0].mxu0 %v337
        %v373 = vpop.f32.mrb[0].mxu0
        %v374 = vadd.f32 0.0, %v373
        %v375 = vpop.f32.mrb[0].mxu0
        %v376 = vpop.f32.mrb[0].mxu0
        %v377 = vadd.f32 0.0, %v376
        %v378 = vpop.f32.mrb[0].mxu0
        %379 = vdwg.mxu0
        %v380 = vpack.c.bf16 %v377, %v374
        %v381 = vld [vmem:[%s276] sm:$0xff]
        %v382 = vld [vmem:[%s276 + $0x8] sm:$0xff]
        %v383 = vld [vmem:[%s3] sm:$0xf]
        %v384 = vld [vmem:[%s3 + $0x4] sm:$0xf]
        %v385 = vld [vmem:[%s3 + $0x8] sm:$0xf]
        %v386 = vld [vmem:[%s3 + $0xc] sm:$0xf]
        %v387 = vld [vmem:[%s4] sm:$0x1]
        %v389 = vlaneseq
        %v390 = vshrl.u32 %v389, 7
        %v391 = vsub.s32 0, %v390
        %v392 = vrot.slane %v387, %v391
        %v398 = vunpack.c.l.b16 %v383
        %v399 = vunpack.c.l.b16 %v384
        %v400 = vunpack.c.l.b16 %v385
        %v401 = vunpack.c.l.b16 %v386
        %v402 = vpack.c.b16 %v399, %v398
        %v403 = vpack.c.b16 %v401, %v400
        %vm406 = vcmask 261120
        %v408 = vsel %vm406, %v380, 0
        %410 = vmatprep.subr.bf16.mxu0 0
        %411 = vmatpush1.bf16.msra.mxu0 %v402
        %412 = vmatprep.subr.bf16.mxu0 0
        %413 = vmatpush1.bf16.msra.mxu0 %v403
        %414 = vmatprep.subr.bf16.mxu0 0
        %415 = vmatpush1.bf16.msra.mxu0 0
        %416 = vmatprep.subr.bf16.mxu0 0
        %417 = vmatpush1.bf16.msra.mxu0 0
        %418 = vmatprep.subr.bf16.mxu0 0
        %419 = vmatpush1.bf16.msra.mxu0 0
        %420 = vmatprep.subr.bf16.mxu0 0
        %421 = vmatpush1.bf16.msra.mxu0 0
        %422 = vmatprep.subr.bf16.mxu0 0
        %423 = vmatpush1.bf16.msra.mxu0 0
        %424 = vmatprep.subr.bf16.mxu0 0
        %425 = vmatpush1.bf16.msra.mxu0 0
        %426 = vmatprep.subr.bf16.mxu0 0
        %427 = vmatpush1.bf16.msra.mxu0 0
        %428 = vmatprep.subr.bf16.mxu0 0
        %429 = vmatpush1.bf16.msra.mxu0 0
        %430 = vmatprep.subr.bf16.mxu0 0
        %431 = vmatpush1.bf16.msra.mxu0 0
        %432 = vmatprep.subr.bf16.mxu0 0
        %433 = vmatpush1.bf16.msra.mxu0 0
        %434 = vmatprep.subr.bf16.mxu0 0
        %435 = vmatpush1.bf16.msra.mxu0 0
        %436 = vmatprep.subr.bf16.mxu0 0
        %437 = vmatpush1.bf16.msra.mxu0 0
        %438 = vmatprep.subr.bf16.mxu0 0
        %439 = vmatpush1.bf16.msra.mxu0 0
        %440 = vmatprep.subr.bf16.mxu0 0
        %441 = vmatpush1.bf16.msra.mxu0 0
        %442 = vmatprep.mubr.bf16.mxu0 0
        %443 = vmatmul.mubr.bf16.gmra.mrb[0].mxu0 %v408
        %v444 = vpop.f32.mrb[0].mxu0
        %v445 = vadd.f32 %v392, %v444
        %v446 = vpop.f32.mrb[0].mxu0
        %v447 = vpop.f32.mrb[0].mxu0
        %v448 = vadd.f32 %v392, %v447
        %v449 = vpop.f32.mrb[0].mxu0
        %450 = vdwg.mxu0
        %451 = vst [vmem:[%s265] sm:$0xff] %v445
        %452 = vst [vmem:[%s265 + $0x8] sm:$0xff] %v448
        %vm453 = vcmp.lt.s32.totalorder %v289, 2
        %v454 = vsel %vm453, %v445, -1e+30
        %v455 = vsel %vm453, %v448, -1e+30
        %456 = vmax.xlane.f32.xlu0 %v454
        %v457 = vpop.xlane.xlu0 %456
        %458 = vmax.xlane.f32.xlu0 %v455
        %v459 = vpop.xlane.xlu0 %458
        %v460 = vsub.f32 %v454, %v457
        %v461 = vsub.f32 %v455, %v459
        %v462 = vmul.f32 %v460, 1.442695
        %v463 = vpow.pop %v462
        %v464 = vmul.f32 %v461, 1.442695
        %v465 = vpow.pop %v464
        %466 = vadd.xlane.f32.xlu0 %v463
        %v467 = vpop.xlane.xlu0 %466
        %468 = vadd.xlane.f32.xlu0 %v465
        %v469 = vpop.xlane.xlu0 %468
        %v470 = vlog2.pop %v467
        %v471 = vmul.f32 %v470, 0.6931472
        %v472 = vlog2.pop %v469
        %v473 = vmul.f32 %v472, 0.6931472
        %v474 = vadd.f32 %v457, %v471
        %v475 = vadd.f32 %v459, %v473
        %476 = vset.pattern.permute.xlu0 0
        %477 = vperm.xlu0 %476, %v381
        %v478 = vpop.permute.xlu0 %477
        %479 = vset.pattern.permute.xlu0 0
        %480 = vperm.xlu0 %479, %v382
        %v481 = vpop.permute.xlu0 %480
        %vm482 = vcmp.eq.s32.totalorder %v289, %v478
        %vm483 = vcmp.eq.s32.totalorder %v289, %v481
        %v484 = vsel %vm482, %v445, 0.0
        %v485 = vsel %vm483, %v448, 0.0
        %486 = vadd.xlane.f32.xlu0 %v484
        %v487 = vpop.xlane.xlu0 %486
        %488 = vadd.xlane.f32.xlu0 %v485
        %v489 = vpop.xlane.xlu0 %488
        %v490 = vsub.f32 %v474, %v487
        %v491 = vsub.f32 %v475, %v489
        %s492 = smul.u32 %s24, 16
        %v493 = vlaneseq
        %v494 = vshrl.u32 %v493, 7
        %v495 = vadd.s32 %v494, 8
        %v496 = vstv %s492
        %v497 = vadd.s32 %v496, %v494
        %v498 = vadd.s32 %v496, %v495
        %vm499 = vcmp.lt.s32.totalorder %v497, 28
        %vm500 = vcmp.lt.s32.totalorder %v498, 28
        %v501 = vsel %vm499, %v490, 0.0
        %v502 = vsel %vm500, %v491, 0.0
        %vm503 = vcmask 7168
        %v504 = vsel %vm503, %v501, 0.0
        %v505 = vsel %vm503, %v502, 0.0
        %v506 = vadd.f32 %v504, %v505
        %507 = vadd.xlane.f32.xlu0 %v506
        %v508 = vpop.xlane.xlu0 %507
        %v509 = vrot.slane %v508, 4
        %v510 = vadd.f32 %v508, %v509
        %v511 = vrot.slane %v510, 2
        %v512 = vadd.f32 %v510, %v511
        %v513 = vrot.slane %v512, 1
        %v514 = vadd.f32 %v512, %v513
        %s515 = vtos %v514
        %v516 = vstv %s515
        %517 = vst [vmem:[%s271] sm:$0x1] %v516
        %s518 = sand.u32 %s147, 1
        %s519 = scalar_lea.sflag [#allocation3], %s518
        %s520 = sand.u32 %s147, 1
        %s521 = smul.addr %s520, 16
        %s522 = scalar_lea.vmem [#allocation2], %s521
        %s523 = sand.u32 %s173, 1
        %s524 = scalar_lea.sflag [#allocation5], %s523
        %s525 = sand.u32 %s173, 1
        %s526 = scalar_lea.vmem [#allocation4], %s525
        // Predicated region
        $region41: #{tpu_custom_call.1} parent=39 // pred_check
          %p527 = pneg %p157
        $region42: #{tpu_custom_call.1} parent=39 // pred_check_branch
          %529 = sbr.rel (%p527) target = $region44
        $region43: #{tpu_custom_call.1} parent=39 // pred_region
          %s530 = smul.u32 2, %s24
          %s532 = ssub.s32 256, 256
          %533 = vsyncadd %s519, %s532
          %s534 = smul.addr %s530, 128
          %s535 = scalar_lea.hbm %s5, %s534
          %s536 = sshll.u32 %s522, 4
          %s537 = int_to_ptr.vmem [resolvable:$true] %s536
          %542 = dma.vmem_to_hbm [thread:$0]  %s537, 256, %s535, %s519, 128, 128, 8
        $region44: #{tpu_custom_call.1} parent=39 // pred_fallthru
          _
        // Predicated region
        $region45: #{tpu_custom_call.1} parent=39 // pred_check
          %p543 = pneg %p183
        $region46: #{tpu_custom_call.1} parent=39 // pred_check_branch
          %545 = sbr.rel (%p543) target = $region48
        $region47: #{tpu_custom_call.1} parent=39 // pred_region
          %s547 = ssub.s32 16, 16
          %548 = vsyncadd %s524, %s547
          %s549 = smul.addr %s24, 16
          %s550 = scalar_lea.hbm %s6, %s549
          %s552 = sshll.u32 %s526, 4
          %s553 = int_to_ptr.vmem [resolvable:$true] %s552
          %555 = dma.vmem_to_hbm [thread:$0]  %s553, 16, %s550, %s524
        $region48: #{tpu_custom_call.1} parent=39 // pred_fallthru
          _
      $region40: #{tpu_custom_call.1} parent=5 // pred_fallthru
        _
      %p556 = scmp.le.s32.totalorder 2, %s19
      // Predicated region
      $region49: #{tpu_custom_call.1} parent=5 // pred_check
        %p557 = pneg %p556
      $region50: #{tpu_custom_call.1} parent=5 // pred_check_branch
        %559 = sbr.rel (%p557) target = $region52
      $region51: #{tpu_custom_call.1} parent=5 // pred_region
        %s560 = ssub.s32 %s19, 2
        // Predicated region
        $region53: #{tpu_custom_call.1} parent=51 // pred_check
          %p561 = pneg %p163
        $region54: #{tpu_custom_call.1} parent=51 // pred_check_branch
          %563 = sbr.rel (%p561) target = $region56
        $region55: #{tpu_custom_call.1} parent=51 // pred_region
          %s564 = sand.u32 %s148, 1
          %s565 = scalar_lea.sflag [#allocation3], %s564
          %s566 = sand.u32 %s148, 1
          %s567 = smul.addr %s566, 16
          %s568 = scalar_lea.vmem [#allocation2], %s567
          %569 = dma.done %s565, 256
        $region56: #{tpu_custom_call.1} parent=51 // pred_fallthru
          _
        // Predicated region
        $region57: #{tpu_custom_call.1} parent=51 // pred_check
          %p570 = pneg %p189
        $region58: #{tpu_custom_call.1} parent=51 // pred_check_branch
          %572 = sbr.rel (%p570) target = $region60
        $region59: #{tpu_custom_call.1} parent=51 // pred_region
          %s573 = sand.u32 %s174, 1
          %s574 = scalar_lea.sflag [#allocation5], %s573
          %s575 = sand.u32 %s174, 1
          %s576 = scalar_lea.vmem [#allocation4], %s575
          %577 = dma.done %s574, 16
        $region60: #{tpu_custom_call.1} parent=51 // pred_fallthru
          _
      $region52: #{tpu_custom_call.1} parent=5 // pred_fallthru
        _
    $region6: #{tpu_custom_call.1} parent=1 // loop_footer
      %s23 = sadd.s32 1, %s19
    $region7: #{tpu_custom_call.1} parent=1 // loop_footer_branch
      %18 = sbr.rel target = $region3
    $region8: #{tpu_custom_call.1} parent=1 // loop_exit
      _
    %578 = vsyncpa [#allocation3], 1
    %s579 = scalar_lea.sflag [#allocation3], 1
    %580 = vsyncpa %s579, 1
    %581 = vsyncpa [#allocation5], 1
    %s582 = scalar_lea.sflag [#allocation5], 1
    %583 = vsyncpa %s582, 1

</llo_original>
